<compile_context>
chip_gen: v5e
topology: v5e:2x2
jax: 0.10.0
libtpu: 0.0.40
codegen_flags: <defaults>
</compile_context>

<pallas_src>
import jax
import jax.numpy as jnp
from jax.experimental import pallas as pl
from jax.experimental.pallas import tpu as pltpu


def _round_up(v, m):
    return (v + m - 1) // m * m


def _linear_kernel(x_ref, w_ref, b_ref, o_ref, acc_ref):
    # x_ref: (tm, tk)   w_ref: (tk, tn)   b_ref: (1, tn)
    # o_ref: (tm, tn)   acc_ref: (tm, tn) f32 scratch
    k = pl.program_id(2)

    @pl.when(k == 0)
    def _():
        acc_ref[...] = jnp.zeros_like(acc_ref)

    xv = x_ref[...]
    wv = w_ref[...]
    if wv.dtype != xv.dtype:
        # bf16-streamed weight: up-cast in-kernel (tile-local VPU cast); only
        # the weight is quantized, accumulation stays f32.
        wv = wv.astype(xv.dtype)

    acc_ref[...] += jnp.dot(xv, wv, preferred_element_type=jnp.float32)

    @pl.when(k == pl.num_programs(2) - 1)
    def _():
        o_ref[...] = (acc_ref[...] + b_ref[...]).astype(o_ref.dtype)


class PallasClassifier:
    """y = x @ W.T + b with weight/bias prepared (padded, transposed, cast) once."""

    def __init__(self, weight, bias, *, weight_dtype=None, tn=None, tk=None):
        N, K = weight.shape
        assert bias.shape == (N,)
        self.N, self.K = N, K

        # Lane/MXU aligned class/contraction tiles. Multiples of 128; sized so
        # the max footprint fits every generation (incl. v7x's 64 MiB VMEM).
        self.tn = tn if tn is not None else min(512, _round_up(N, 128))
        self.tk = tk if tk is not None else min(2048, _round_up(K, 128))
        Np = _round_up(N, self.tn)
        Kp = _round_up(K, self.tk)
        self.Np, self.Kp = Np, Kp

        w = weight
        if weight_dtype is not None and w.dtype != weight_dtype:
            w = w.astype(weight_dtype)
        # Pad + transpose ONCE (amortized over all forward calls). The kernel
        # then contracts (tm,tk) x (tk,tn) with no per-tile weight transpose.
        if Np != N or Kp != K:
            w = jnp.pad(w, ((0, Np - N), (0, Kp - K)))
        self.w_t = jnp.transpose(w)  # (Kp, Np), streamed dtype
        b = bias if Np == N else jnp.pad(bias, (0, Np - N))
        self.b2d = b.reshape(1, Np).astype(jnp.float32)

    def __call__(self, x, *, tm=None):
        B, K = x.shape
        assert K == self.K, f"expected input_dim={self.K}, got {K}"
        tn, tk = self.tn, self.tk
        Np, Kp = self.Np, self.Kp

        # Larger batch tile => fewer full re-streams of the weight from HBM.
        if tm is None:
            tm = min(512, _round_up(B, 8))
        Bp = _round_up(B, tm)

        # Keep >= 2 parallel tiles when possible so v7x's 2nd TensorCore isn't idle.
        while (
            (Bp // tm) * (Np // tn) < 2
            and tn > 128
            and (tn // 2) % 128 == 0
            and Np % (tn // 2) == 0
        ):
            tn //= 2

        xp = x if (Bp == B and Kp == K) else jnp.pad(x, ((0, Bp - B), (0, Kp - K)))

        grid = (Bp // tm, Np // tn, Kp // tk)
        out_dtype = x.dtype
        w_itemsize = jnp.dtype(self.w_t.dtype).itemsize
        x_itemsize = jnp.dtype(x.dtype).itemsize
        o_itemsize = jnp.dtype(out_dtype).itemsize

        # VMEM limit derived from actual tile footprint (+headroom), capped well
        # under v7x's 64 MiB physical VMEM.
        x_blk = tm * tk * x_itemsize
        w_blk = tk * tn * w_itemsize
        b_blk = tn * 4
        o_blk = tm * tn * o_itemsize
        acc_blk = tm * tn * 4
        footprint = 2 * (x_blk + w_blk + b_blk) + 2 * o_blk + acc_blk
        vmem_limit = min(44 * 1024 * 1024, max(footprint * 3 // 2 + (4 << 20), 16 << 20))

        # HBM traffic including revisits: weight re-read per batch tile, x
        # re-read per class tile.
        n_btiles = Bp // tm
        n_ntiles = Np // tn
        bytes_accessed = int(
            Bp * Kp * x_itemsize * n_ntiles
            + Kp * Np * w_itemsize * n_btiles
            + Np * 4 * n_btiles
            + Bp * Np * o_itemsize
        )

        out = pl.pallas_call(
            _linear_kernel,
            out_shape=jax.ShapeDtypeStruct((Bp, Np), out_dtype),
            grid_spec=pltpu.PrefetchScalarGridSpec(
                num_scalar_prefetch=0,
                grid=grid,
                in_specs=[
                    pl.BlockSpec((tm, tk), lambda i, j, k: (i, k)),   # x tile
                    pl.BlockSpec((tk, tn), lambda i, j, k: (k, j)),   # weight tile (K, N)
                    pl.BlockSpec((1, tn), lambda i, j, k: (0, j)),    # bias row tile
                ],
                out_specs=pl.BlockSpec((tm, tn), lambda i, j, k: (i, j)),
                scratch_shapes=[pltpu.VMEM((tm, tn), jnp.float32)],
            ),
            compiler_params=pltpu.CompilerParams(
                dimension_semantics=("parallel", "parallel", "arbitrary"),
                vmem_limit_bytes=int(vmem_limit),
            ),
            cost_estimate=pl.CostEstimate(
                flops=int(2 * Bp * Kp * Np),
                transcendentals=0,
                bytes_accessed=bytes_accessed,
            ),
        )(xp, self.w_t, self.b2d)

        if Bp != B or Np != self.N:
            out = out[:B, : self.N]
        return out


def classifier_forward(x, weight, bias, **kwargs):
    """One-shot convenience wrapper (param prep not amortized across calls)."""
    return PallasClassifier(weight, bias, **kwargs)(x)


if __name__ == "__main__":
    # Small, deterministic synthetic setup matching the module's forward.
    batch = 8
    input_dim = 32
    num_classes = 8

    key = jax.random.PRNGKey(0)
    kx, kw, kb = jax.random.split(key, 3)

    x = jax.random.normal(kx, (batch, input_dim), dtype=jnp.float32)
    # Deterministic init mimicking nn.Linear's uniform(-1/sqrt(fan_in), 1/sqrt(fan_in)).
    bound = 1.0 / jnp.sqrt(jnp.float32(input_dim))
    weight = jax.random.uniform(
        kw, (num_classes, input_dim), minval=-bound, maxval=bound, dtype=jnp.float32
    )
    bias = jax.random.uniform(
        kb, (num_classes,), minval=-bound, maxval=bound, dtype=jnp.float32
    )

    clf = PallasClassifier(weight, bias)           # f32 weights: exact reference match
    y = jax.block_until_ready(clf(x))
    y_ref = x @ weight.T + bias
    assert y.shape == (batch, num_classes)
    assert jnp.allclose(y, y_ref, atol=1e-5, rtol=1e-5), "mismatch vs reference"

    # Larger ragged case exercising padding + a multi-tile parallel grid.
    B2, K2, N2 = 130, 300, 1000
    k2x, k2w, k2b = jax.random.split(jax.random.PRNGKey(1), 3)
    x2 = jax.random.normal(k2x, (B2, K2), dtype=jnp.float32)
    w2 = jax.random.normal(k2w, (N2, K2), dtype=jnp.float32) * 0.02
    b2 = jax.random.normal(k2b, (N2,), dtype=jnp.float32) * 0.02
    clf2 = PallasClassifier(w2, b2)
    y2 = jax.block_until_ready(clf2(x2))
    y2_ref = x2 @ w2.T + b2
    assert y2.shape == (B2, N2)
    assert jnp.allclose(y2, y2_ref, atol=1e-4, rtol=1e-4), "mismatch vs reference (ragged)"

    # bf16 weight-streaming path (halves weight HBM traffic; f32 accumulation).
    clf2_bf16 = PallasClassifier(w2, b2, weight_dtype=jnp.bfloat16)
    y2b = jax.block_until_ready(clf2_bf16(x2))
    assert y2b.shape == (B2, N2)
    assert jnp.allclose(y2b, y2_ref, atol=5e-2, rtol=5e-2), "mismatch vs reference (bf16 weights)"

    print("KERNEL_OK")
</pallas_src>

<mosaic_0001>
module attributes {stable_mosaic.version = 11 : i64} {
  func.func @_linear_kernel(%arg0: i32, %arg1: i32, %arg2: i32, %arg3: memref<8x128xf32, #tpu.memory_space<vmem>>, %arg4: memref<128x128xf32, #tpu.memory_space<vmem>>, %arg5: memref<1x128xf32, #tpu.memory_space<vmem>>, %arg6: memref<8x128xf32, #tpu.memory_space<vmem>>, %arg7: memref<8x128xf32, #tpu.memory_space<vmem>>) attributes {dimension_semantics = [#tpu.dimension_semantics<parallel>, #tpu.dimension_semantics<parallel>, #tpu.dimension_semantics<arbitrary>], iteration_bounds = array<i64: 1, 1, 1>, scalar_prefetch = 0 : i64, scratch_operands = 1 : i64, tpu.core_type = #tpu.core_type<tc>, window_params = [{transform_indices = @transform_0, window_bounds = array<i64: 8, 128>}, {transform_indices = @transform_1, window_bounds = array<i64: 128, 128>}, {transform_indices = @transform_2, window_bounds = array<i64: 1, 128>}, {transform_indices = @transform_3, window_bounds = array<i64: 8, 128>}]} {
    %c0_i32 = arith.constant 0 : i32
    %0 = arith.cmpi eq, %arg2, %c0_i32 : i32
    %1 = arith.extui %0 : i1 to i32
    %c0_i32_0 = arith.constant 0 : i32
    %2 = arith.cmpi ne, %1, %c0_i32_0 : i32
    scf.if %2 {
      %cst_10 = arith.constant 0.000000e+00 : f32
      %12 = vector.broadcast %cst_10 : f32 to vector<8x128xf32>
      %c0_11 = arith.constant 0 : index
      %c0_12 = arith.constant 0 : index
      %13 = vector.load %arg7[%c0_11, %c0_12] : memref<8x128xf32, #tpu.memory_space<vmem>>, vector<8x128xf32>
      tpu.vector_store %arg7[%c0_11, %c0_12], %12 {strides = array<i32>} : memref<8x128xf32, #tpu.memory_space<vmem>>, vector<8x128xf32>,
    } else {
    }
    %c0 = arith.constant 0 : index
    %c0_1 = arith.constant 0 : index
    %3 = vector.load %arg3[%c0, %c0_1] : memref<8x128xf32, #tpu.memory_space<vmem>>, vector<8x128xf32>
    %c0_2 = arith.constant 0 : index
    %c0_3 = arith.constant 0 : index
    %4 = vector.load %arg4[%c0_2, %c0_3] : memref<128x128xf32, #tpu.memory_space<vmem>>, vector<128x128xf32>
    %c0_4 = arith.constant 0 : index
    %c0_5 = arith.constant 0 : index
    %5 = vector.load %arg7[%c0_4, %c0_5] : memref<8x128xf32, #tpu.memory_space<vmem>>, vector<8x128xf32>
    %cst = arith.constant dense<0.000000e+00> : vector<8x128xf32>
    %6 = tpu.matmul %3, %4, %cst {dimension_numbers = #tpu.dot_dimension_numbers<[1], [0], [0], [1], [0, 0, 1, 1], [], []>} : vector<8x128xf32>, vector<128x128xf32>, vector<8x128xf32> -> vector<8x128xf32>
    %7 = arith.addf %5, %6 : vector<8x128xf32>
    %c0_6 = arith.constant 0 : index
    %c0_7 = arith.constant 0 : index
    %8 = vector.load %arg7[%c0_6, %c0_7] : memref<8x128xf32, #tpu.memory_space<vmem>>, vector<8x128xf32>
    tpu.vector_store %arg7[%c0_6, %c0_7], %7 {strides = array<i32>} : memref<8x128xf32, #tpu.memory_space<vmem>>, vector<8x128xf32>,
    %c0_i32_8 = arith.constant 0 : i32
    %9 = arith.cmpi eq, %arg2, %c0_i32_8 : i32
    %10 = arith.extui %9 : i1 to i32
    %c0_i32_9 = arith.constant 0 : i32
    %11 = arith.cmpi ne, %10, %c0_i32_9 : i32
    scf.if %11 {
      %c0_10 = arith.constant 0 : index
      %c0_11 = arith.constant 0 : index
      %12 = vector.load %arg7[%c0_10, %c0_11] : memref<8x128xf32, #tpu.memory_space<vmem>>, vector<8x128xf32>
      %c0_12 = arith.constant 0 : index
      %c0_13 = arith.constant 0 : index
      %13 = vector.load %arg5[%c0_12, %c0_13] : memref<1x128xf32, #tpu.memory_space<vmem>>, vector<1x128xf32>
      %14 = vector.broadcast %13 : vector<1x128xf32> to vector<8x128xf32>
      %15 = arith.addf %12, %14 : vector<8x128xf32>
      %c0_14 = arith.constant 0 : index
      %c0_15 = arith.constant 0 : index
      %16 = vector.load %arg6[%c0_14, %c0_15] : memref<8x128xf32, #tpu.memory_space<vmem>>, vector<8x128xf32>
      tpu.vector_store %arg6[%c0_14, %c0_15], %15 {strides = array<i32>} : memref<8x128xf32, #tpu.memory_space<vmem>>, vector<8x128xf32>,
    } else {
    }
    return
  }
  func.func @transform_0(%arg0: i32, %arg1: i32, %arg2: i32) -> (i32, i32) {
    %c0_i32 = arith.constant 0 : i32
    return %arg0, %arg2 : i32, i32
  }
  func.func @transform_1(%arg0: i32, %arg1: i32, %arg2: i32) -> (i32, i32) {
    %c0_i32 = arith.constant 0 : i32
    return %arg2, %arg1 : i32, i32
  }
  func.func @transform_2(%arg0: i32, %arg1: i32, %arg2: i32) -> (i32, i32) {
    %c0_i32 = arith.constant 0 : i32
    %c0_i32_0 = arith.constant 0 : i32
    return %c0_i32, %arg1 : i32, i32
  }
  func.func @transform_3(%arg0: i32, %arg1: i32, %arg2: i32) -> (i32, i32) {
    %c0_i32 = arith.constant 0 : i32
    return %arg0, %arg1 : i32, i32
  }
}

</mosaic_0001>

<llo_original>
// kernel: tpu_custom_call.1
$region0: #{tpu_custom_call.1}
  #allocation0 [shape = 'u32[]', space=smem, size = 0x4, offset = 0x4, fixed_abs, tag = 'smem constant byte address 0x4 - core index']
  #allocation1 [shape = 'u32[72,128]{1,0:T(1,128)}', space=vmem, size = 0x9000, scoped, tag = 'internal scratch']
  #allocation2 [shape = 'f32[8,128]{1,0:T(8,128)}', space=vmem, size = 0x1000, scoped, tag = 'scratch operand']
  %s0 = inlined_call_operand.hbm [shape: f32[8,128], index: 0, kind: input, shape index: {}]
  %s1 = inlined_call_operand.hbm [shape: f32[128,128], index: 1, kind: input, shape index: {}]
  %s2 = inlined_call_operand.vmem [shape: f32[1,128], index: 2, kind: input, shape index: {}]
  %s3 = inlined_call_operand.hbm [shape: f32[8,128], index: 3, kind: output, shape index: {}]
  %s4 = sld [smem:[#allocation0]]
  $region38: #{tpu_custom_call.1} parent=0
    _
  %s6 = ssub.s32 1, %s4
  %s7 = scalar_select 0, %s6, %s4
  $region1: #{tpu_custom_call.1} parent=0
    #allocation3 [shape = 'u8[4096]{0}', space=vmem, size = 0x1000, scoped, tag = 'input window, operand 0, single buffered']
    #allocation4 [shape = 's32[1]{0}', space=sflag, size = 0x4, scoped, tag = 'scoped memory for tpu_custom_call.1']
    #allocation5 [shape = 's32[1]{0}', space=sflag, size = 0x4, scoped, tag = 'scoped memory for tpu_custom_call.1']
    #allocation6 [shape = 'u8[65536]{0}', space=vmem, size = 0x10000, scoped, tag = 'input window, operand 1, single buffered']
    #allocation7 [shape = 's32[1]{0}', space=sflag, size = 0x4, scoped, tag = 'scoped memory for tpu_custom_call.1']
    #allocation8 [shape = 'u8[4096]{0}', space=vmem, size = 0x1000, scoped, tag = 'output window, operand 0, single buffered']
    %8 = vsyncpa [#allocation4], 0
    %9 = vsyncpa [#allocation7], 0
    %10 = vsyncpa [#allocation5], 0
    // Predicated region
    $region2: #{tpu_custom_call.1} parent=1 // pred_check
      _
    $region3: #{tpu_custom_call.1} parent=1 // pred_check_branch
      %12 = sbr.rel (0) target = $region5
    $region4: #{tpu_custom_call.1} parent=1 // pred_region
      %14 = vsyncadd [#allocation4], 0
      %s16 = sshll.u32 %s0, 4
      %s17 = int_to_ptr.hbm [resolvable:$true] %s16
      %s18 = sshll.u32 [#allocation3], 4
      %s19 = int_to_ptr.vmem [resolvable:$true] %s18
      %21 = dma.hbm_to_vmem [thread:$0]  %s17, 128, %s19, [#allocation4]
    $region5: #{tpu_custom_call.1} parent=1 // pred_fallthru
      _
    // Predicated region
    $region6: #{tpu_custom_call.1} parent=1 // pred_check
      _
    $region7: #{tpu_custom_call.1} parent=1 // pred_check_branch
      %23 = sbr.rel (0) target = $region9
    $region8: #{tpu_custom_call.1} parent=1 // pred_region
      %25 = vsyncadd [#allocation7], 0
      %s26 = sshll.u32 %s1, 4
      %s27 = int_to_ptr.hbm [resolvable:$true] %s26
      %s28 = sshll.u32 [#allocation6], 4
      %s29 = int_to_ptr.vmem [resolvable:$true] %s28
      %34 = dma.hbm_to_vmem [thread:$0]  %s27, 2048, %s29, [#allocation7], 128, 128, 8
    $region9: #{tpu_custom_call.1} parent=1 // pred_fallthru
      _
    // Predicated region
    $region10: #{tpu_custom_call.1} parent=1 // pred_check
      _
    $region11: #{tpu_custom_call.1} parent=1 // pred_check_branch
      %36 = sbr.rel (0) target = $region13
    $region12: #{tpu_custom_call.1} parent=1 // pred_region
      _
    $region13: #{tpu_custom_call.1} parent=1 // pred_fallthru
      _
    // Predicated region
    $region14: #{tpu_custom_call.1} parent=1 // pred_check
      _
    $region15: #{tpu_custom_call.1} parent=1 // pred_check_branch
      %38 = sbr.rel (0) target = $region17
    $region16: #{tpu_custom_call.1} parent=1 // pred_region
      %40 = dma.done [#allocation4], 128
    $region17: #{tpu_custom_call.1} parent=1 // pred_fallthru
      _
    // Predicated region
    $region18: #{tpu_custom_call.1} parent=1 // pred_check
      _
    $region19: #{tpu_custom_call.1} parent=1 // pred_check_branch
      %42 = sbr.rel (0) target = $region21
    $region20: #{tpu_custom_call.1} parent=1 // pred_region
      %44 = dma.done [#allocation7], 2048
    $region21: #{tpu_custom_call.1} parent=1 // pred_fallthru
      _
    %p45 = scmp.eq.s32.totalorder 0, 0
    // Predicated region
    $region22: #{tpu_custom_call.1} parent=1 // pred_check
      %p46 = pneg %p45
    $region23: #{tpu_custom_call.1} parent=1 // pred_check_branch
      %48 = sbr.rel (%p46) target = $region25
    $region24: #{tpu_custom_call.1} parent=1 // pred_region
      %49 = vst [vmem:[#allocation2] sm:$0xff] 0.0
    $region25: #{tpu_custom_call.1} parent=1 // pred_fallthru
      _
    %v50 = vld [vmem:[#allocation3] sm:$0xff]
    %v51 = vld [vmem:[#allocation6] sm:$0xff]
    %v52 = vld [vmem:[#allocation6 + $0x8] sm:$0xff]
    %v53 = vld [vmem:[#allocation6 + $0x10] sm:$0xff]
    %v54 = vld [vmem:[#allocation6 + $0x18] sm:$0xff]
    %v55 = vld [vmem:[#allocation6 + $0x20] sm:$0xff]
    %v56 = vld [vmem:[#allocation6 + $0x28] sm:$0xff]
    %v57 = vld [vmem:[#allocation6 + $0x30] sm:$0xff]
    %v58 = vld [vmem:[#allocation6 + $0x38] sm:$0xff]
    %v59 = vld [vmem:[#allocation6 + $0x40] sm:$0xff]
    %v60 = vld [vmem:[#allocation6 + $0x48] sm:$0xff]
    %v61 = vld [vmem:[#allocation6 + $0x50] sm:$0xff]
    %v62 = vld [vmem:[#allocation6 + $0x58] sm:$0xff]
    %v63 = vld [vmem:[#allocation6 + $0x60] sm:$0xff]
    %v64 = vld [vmem:[#allocation6 + $0x68] sm:$0xff]
    %v65 = vld [vmem:[#allocation6 + $0x70] sm:$0xff]
    %v66 = vld [vmem:[#allocation6 + $0x78] sm:$0xff]
    %v67 = vld [vmem:[#allocation2] sm:$0xff]
    %68 = vmatpush.msra.mxu0 %v66
    %69 = vmatpush.msra.mxu0 %v65
    %70 = vmatpush.msra.mxu0 %v64
    %71 = vmatpush.msra.mxu0 %v63
    %72 = vmatpush.msra.mxu0 %v62
    %73 = vmatpush.msra.mxu0 %v61
    %74 = vmatpush.msra.mxu0 %v60
    %75 = vmatpush.msra.mxu0 %v59
    %76 = vmatpush.msra.mxu0 %v58
    %77 = vmatpush.msra.mxu0 %v57
    %78 = vmatpush.msra.mxu0 %v56
    %79 = vmatpush.msra.mxu0 %v55
    %80 = vmatpush.msra.mxu0 %v54
    %81 = vmatpush.msra.mxu0 %v53
    %82 = vmatpush.msra.mxu0 %v52
    %83 = vmatpush.msra.mxu0 %v51
    %84 = vmatmul.f32.gmra.mxu0 %v50
    %v85 = vpop.f32.mrf.mxu0
    %v86 = vadd.f32 0.0, %v85
    %87 = vdwg.mxu0
    %v88 = vadd.f32 %v67, %v86
    %89 = vst [vmem:[#allocation2] sm:$0xff] %v88
    // Predicated region
    $region26: #{tpu_custom_call.1} parent=1 // pred_check
      %p90 = pneg %p45
    $region27: #{tpu_custom_call.1} parent=1 // pred_check_branch
      %92 = sbr.rel (%p90) target = $region29
    $region28: #{tpu_custom_call.1} parent=1 // pred_region
      %v93 = vld [vmem:[#allocation2] sm:$0xff]
      %v94 = vld [vmem:[%s2] sm:$0x1]
      %v96 = vperm.slane %v94, 0
      %v98 = vadd.f32 %v93, %v96
      %99 = vst [vmem:[#allocation8] sm:$0xff] %v98
    $region29: #{tpu_custom_call.1} parent=1 // pred_fallthru
      _
    // Predicated region
    $region30: #{tpu_custom_call.1} parent=1 // pred_check
      _
    $region31: #{tpu_custom_call.1} parent=1 // pred_check_branch
      %101 = sbr.rel (0) target = $region33
    $region32: #{tpu_custom_call.1} parent=1 // pred_region
      %103 = vsyncadd [#allocation5], 0
      %s105 = sshll.u32 [#allocation8], 4
      %s106 = int_to_ptr.vmem [resolvable:$true] %s105
      %s107 = sshll.u32 %s3, 4
      %s108 = int_to_ptr.hbm [resolvable:$true] %s107
      %110 = dma.vmem_to_hbm [thread:$0]  %s106, 128, %s108, [#allocation5]
    $region33: #{tpu_custom_call.1} parent=1 // pred_fallthru
      _
    // Predicated region
    $region34: #{tpu_custom_call.1} parent=1 // pred_check
      _
    $region35: #{tpu_custom_call.1} parent=1 // pred_check_branch
      %112 = sbr.rel (0) target = $region37
    $region36: #{tpu_custom_call.1} parent=1 // pred_region
      %114 = dma.done [#allocation5], 128
    $region37: #{tpu_custom_call.1} parent=1 // pred_fallthru
      _
    %115 = vsyncpa [#allocation4], 1
    %116 = vsyncpa [#allocation7], 1
    %117 = vsyncpa [#allocation5], 1

</llo_original>
